<compile_context>
chip_gen: v5e
topology: v5e:2x2
jax: 0.10.0
libtpu: 0.0.40
codegen_flags: <defaults>
</compile_context>

<pallas_src>
import functools

import jax
import jax.numpy as jnp
from jax import lax
from jax.experimental import pallas as pl
from jax.experimental.pallas import tpu as pltpu

LANE = 128


# ----------------------------------------------------------------------------
# Plain-JAX glue: sampling / ball query (data-dependent argmax / sort — no
# clean Pallas equivalent, stays in XLA).
# ----------------------------------------------------------------------------
def square_distance(src, dst):
    # src [B,N,C], dst [B,M,C] -> [B,N,M]
    dist = -2.0 * jnp.matmul(src, jnp.swapaxes(dst, 1, 2))
    dist = dist + jnp.sum(src ** 2, -1)[:, :, None]
    dist = dist + jnp.sum(dst ** 2, -1)[:, None, :]
    return dist


def index_points(points, idx):
    # points [B,N,C], idx [B,...] -> [B,...,C]
    return jax.vmap(lambda p, i: p[i])(points, idx)


def farthest_point_sample(xyz, npoint):
    # TODO(synk): torch seeds `farthest` with randint; we use index 0 for determinism.
    B, N, _ = xyz.shape

    def body(i, carry):
        centroids, distance, farthest = carry
        centroids = centroids.at[:, i].set(farthest)
        centroid = jax.vmap(lambda p, f: p[f])(xyz, farthest)[:, None, :]  # [B,1,3]
        dist = jnp.sum((xyz - centroid) ** 2, -1)
        distance = jnp.minimum(distance, dist)
        farthest = jnp.argmax(distance, -1).astype(jnp.int32)
        return centroids, distance, farthest

    centroids = jnp.zeros((B, npoint), jnp.int32)
    distance = jnp.full((B, N), 1e10, jnp.float32)
    farthest = jnp.zeros((B,), jnp.int32)
    centroids, _, _ = lax.fori_loop(0, npoint, body, (centroids, distance, farthest))
    return centroids


def query_ball_point(radius, nsample, xyz, new_xyz):
    # xyz [B,N,3], new_xyz [B,S,3] -> [B,S,nsample] int32 (all indices < N)
    B, N, _ = xyz.shape
    S = new_xyz.shape[1]
    sqrdists = square_distance(new_xyz, xyz)  # [B,S,N]
    group_idx = jnp.broadcast_to(jnp.arange(N, dtype=jnp.int32), (B, S, N))
    group_idx = jnp.where(sqrdists > radius ** 2, N, group_idx)
    group_idx = jnp.sort(group_idx, axis=-1)[:, :, :nsample]
    group_first = jnp.broadcast_to(group_idx[:, :, :1], group_idx.shape)
    group_idx = jnp.where(group_idx == N, group_first, group_idx)
    return group_idx.astype(jnp.int32)


# ----------------------------------------------------------------------------
# Fused Pallas kernel: gather + per-scale MLP (folded BN) + ReLU + max over K
# ----------------------------------------------------------------------------
def _round_up(x, m):
    return ((x + m - 1) // m) * m


def _choose_tile_s(S, K, max_rows=2048):
    """Largest tS with S % tS == 0, (tS % 8 == 0 or tS == S), tS*K <= max_rows."""
    cands = [t for t in range(1, S + 1) if S % t == 0 and (t % 8 == 0 or t == S)]
    fitting = [t for t in cands if t * K <= max_rows]
    return max(fitting) if fitting else min(cands)


def run_scale_fused(feat_all, nxyz_pad, group_idx, layers, *, nsample):
    """One radius scale, fully fused.

    feat_all : [B, N, Cf] f32   channels-last point table ([point feats, xyz])
    nxyz_pad : [B, S, Cf] f32   per-centroid subtrahend ([zeros(D), new_xyz])
    group_idx: [B, S, K]  int32 neighbor indices into the N axis (< N)
    layers   : list of (W [Cin_pad, Cout_pad] bf16, b [1, Cout_pad] f32), BN folded
    returns  : [B, S, Cout_pad] f32 (zero beyond the true last width)
    """
    B, N, Cf = feat_all.shape
    S = nxyz_pad.shape[1]
    K = nsample
    n_layers = len(layers)
    C_pad = layers[-1][0].shape[1]

    tS = _choose_tile_s(S, K)           # sublane-aligned centroid tile
    nS = S // tS
    rows = K * tS                        # K-major row layout: row = k*tS + s

    def kernel(gidx_ref, feat_ref, nxyz_ref, *rest):
        o_ref = rest[2 * n_layers]
        gbuf = rest[2 * n_layers + 1]
        b = pl.program_id(0)
        st = pl.program_id(1)
        row_base = b * S + st * tS

        # In-kernel gather of the K neighbors of each of the tS centroids from
        # the per-batch VMEM point table, with the (-new_xyz) centering fused
        # into the same pass. Indices come from the scalar-prefetched SMEM table.
        # TODO(synk): for very large B*S*K the index table should be tiled/DMA'd
        # instead of scalar-prefetched whole into SMEM.
        @pl.loop(0, K)
        def _(k):
            @pl.loop(0, tS)
            def _(s_local):
                idx = gidx_ref[(row_base + s_local) * K + k]
                gbuf[pl.ds(k * tS + s_local, 1), :] = (
                    feat_ref[pl.ds(idx, 1), :] - nxyz_ref[pl.ds(s_local, 1), :])

        h = gbuf[...]                                         # (rows, Cf) f32
        # 1x1 convs == channel matmuls; bf16 MXU operands, f32 accumulation,
        # f32 bias/ReLU epilogue.
        for l in range(n_layers):
            w = rest[2 * l][...]                              # bf16 (Cin_pad, Cout_pad)
            bias = rest[2 * l + 1][...]                       # f32  (1, Cout_pad)
            acc = jnp.dot(h.astype(jnp.bfloat16), w,
                          preferred_element_type=jnp.float32)
            h = jnp.maximum(acc + bias, 0.0)

        # Max over the K neighbors: running maximum over contiguous aligned
        # (tS, C_pad) slabs (stays on the VALU, no XLU reduce / reshape).
        out = h[0:tS, :]
        for k in range(1, K):
            out = jnp.maximum(out, h[k * tS:(k + 1) * tS, :])
        o_ref[...] = out                                      # lane-dense store

    in_specs = [
        pl.BlockSpec((None, N, Cf), lambda b, st, g: (b, 0, 0)),
        pl.BlockSpec((None, tS, Cf), lambda b, st, g: (b, st, 0)),
    ]
    args = [feat_all, nxyz_pad]
    for (w, bias) in layers:
        in_specs.append(pl.BlockSpec(w.shape, lambda b, st, g: (0, 0)))
        in_specs.append(pl.BlockSpec(bias.shape, lambda b, st, g: (0, 0)))
        args.append(w)
        args.append(bias)

    gidx_flat = group_idx.reshape(-1).astype(jnp.int32)       # SMEM scalar table

    out = pl.pallas_call(
        kernel,
        out_shape=jax.ShapeDtypeStruct((B, S, C_pad), jnp.float32),
        grid_spec=pltpu.PrefetchScalarGridSpec(
            num_scalar_prefetch=1,
            grid=(B, nS),
            in_specs=in_specs,
            out_specs=pl.BlockSpec((None, tS, C_pad), lambda b, st, g: (b, st, 0)),
            scratch_shapes=[pltpu.VMEM((rows, Cf), jnp.float32)],
        ),
        compiler_params=pltpu.CompilerParams(
            dimension_semantics=("parallel", "parallel"),
            # Explicit budget so tiles picked here also fit v7x's 64 MiB part
            # (blocks are a few MiB even at realistic N/S/K with tS capped).
            vmem_limit_bytes=32 * 1024 * 1024,
        ),
    )(gidx_flat, *args)
    return out


# ----------------------------------------------------------------------------
# Parameter init (deterministic), BN(eval) folding, lane padding, bf16 weights
# ----------------------------------------------------------------------------
def init_msg_params(key, in_channel, mlp_list, eps=1e-5):
    params = []
    for mlp in mlp_list:
        last_true = in_channel + 3
        last_pad = last_true                 # first layer consumes the raw feature width
        layers = []
        for out_c in mlp:
            key, k1, k2, k3, k4, k5, k6 = jax.random.split(key, 7)
            w = jax.random.normal(k1, (out_c, last_true), jnp.float32) * 0.1   # Conv2d(.,.,1) weight
            b = jax.random.normal(k2, (out_c,), jnp.float32) * 0.1             # Conv2d bias
            gamma = jax.random.uniform(k3, (out_c,), jnp.float32, 0.5, 1.5)
            beta = jax.random.normal(k4, (out_c,), jnp.float32) * 0.1
            run_mean = jax.random.normal(k5, (out_c,), jnp.float32) * 0.1
            run_var = jax.random.uniform(k6, (out_c,), jnp.float32, 0.5, 1.5)
            s = gamma / jnp.sqrt(run_var + eps)
            w_fused = (w * s[:, None]).T                     # [last_true, out_c]
            b_fused = (b - run_mean) * s + beta              # [out_c]
            out_pad = _round_up(out_c, LANE)
            W = jnp.zeros((last_pad, out_pad), jnp.float32).at[:last_true, :out_c].set(w_fused)
            Bv = jnp.zeros((1, out_pad), jnp.float32).at[0, :out_c].set(b_fused)
            layers.append((W.astype(jnp.bfloat16), Bv))      # bf16 MXU operands, f32 bias
            last_true = out_c
            last_pad = out_pad
        params.append({"layers": layers, "out_dim": mlp[-1]})
    return params


# ----------------------------------------------------------------------------
# Full module forward
# ----------------------------------------------------------------------------
def pointnet_sa_msg_forward(xyz, points, npoint, radius_list, nsample_list, params):
    """xyz [B,3,N], points [B,D,N] -> (new_xyz [B,3,S], new_points [B,D',S])."""
    xyz_t = jnp.transpose(xyz, (0, 2, 1)).astype(jnp.float32)            # [B,N,3]
    points_t = (jnp.transpose(points, (0, 2, 1)).astype(jnp.float32)
                if points is not None else None)
    B, N, _ = xyz_t.shape
    S = npoint

    fps_idx = farthest_point_sample(xyz_t, S)                            # [B,S]
    new_xyz = index_points(xyz_t, fps_idx)                               # [B,S,3]

    if points_t is not None:
        D = points_t.shape[-1]
        feat_all = jnp.concatenate([points_t, xyz_t], axis=-1)           # [B,N,D+3]
        nxyz_pad = jnp.concatenate(
            [jnp.zeros((B, S, D), jnp.float32), new_xyz], axis=-1)       # [B,S,D+3]
    else:
        feat_all = xyz_t
        nxyz_pad = new_xyz

    new_points_list = []
    for i, radius in enumerate(radius_list):
        K = nsample_list[i]
        group_idx = query_ball_point(radius, K, xyz_t, new_xyz)          # [B,S,K]
        out_pad = run_scale_fused(feat_all, nxyz_pad, group_idx,
                                  params[i]["layers"], nsample=K)        # [B,S,Cpad]
        out = out_pad[:, :, :params[i]["out_dim"]]
        new_points_list.append(jnp.transpose(out, (0, 2, 1)))            # [B,Cout,S]

    new_xyz_out = jnp.transpose(new_xyz, (0, 2, 1))                      # [B,3,S]
    new_points_concat = jnp.concatenate(new_points_list, axis=1)
    return new_xyz_out, new_points_concat


if __name__ == "__main__":
    key = jax.random.PRNGKey(0)
    k_xyz, k_pts, k_par = jax.random.split(key, 3)

    # Small shapes consistent with the module
    B, N, D = 2, 16, 4
    npoint = 8
    radius_list = [0.4, 0.8]
    nsample_list = [4, 8]
    in_channel = D
    mlp_list = [[8, 16], [8, 16, 32]]

    xyz = jax.random.uniform(k_xyz, (B, 3, N), jnp.float32)      # [B,3,N]
    points = jax.random.normal(k_pts, (B, D, N), jnp.float32)    # [B,D,N]

    params = init_msg_params(k_par, in_channel, mlp_list)

    fwd = functools.partial(
        pointnet_sa_msg_forward,
        npoint=npoint, radius_list=radius_list,
        nsample_list=nsample_list, params=params)

    new_xyz, new_points = fwd(xyz, points)
    jax.block_until_ready((new_xyz, new_points))

    assert new_xyz.shape == (B, 3, npoint)
    assert new_points.shape == (B, mlp_list[0][-1] + mlp_list[1][-1], npoint)
    assert bool(jnp.all(jnp.isfinite(new_points)))
    print("KERNEL_OK")
</pallas_src>

<mosaic_0001>
module attributes {stable_mosaic.version = 11 : i64} {
  func.func @kernel(%arg0: i32, %arg1: i32, %arg2: memref<64xi32, #tpu.memory_space<smem>>, %arg3: memref<1x16x7xf32, #tpu.memory_space<vmem>>, %arg4: memref<1x8x7xf32, #tpu.memory_space<vmem>>, %arg5: memref<7x128xbf16, #tpu.memory_space<vmem>>, %arg6: memref<1x128xf32, #tpu.memory_space<vmem>>, %arg7: memref<128x128xbf16, #tpu.memory_space<vmem>>, %arg8: memref<1x128xf32, #tpu.memory_space<vmem>>, %arg9: memref<1x8x128xf32, #tpu.memory_space<vmem>>, %arg10: memref<32x7xf32, #tpu.memory_space<vmem>>) attributes {dimension_semantics = [#tpu.dimension_semantics<parallel>, #tpu.dimension_semantics<parallel>], iteration_bounds = array<i64: 2, 1>, scalar_prefetch = 1 : i64, scratch_operands = 1 : i64, tpu.core_type = #tpu.core_type<tc>, window_params = [{transform_indices = @transform_0, window_bounds = array<i64: 1, 16, 7>}, {transform_indices = @transform_1, window_bounds = array<i64: 1, 8, 7>}, {pipeline_mode = #tpu.pipeline_mode<synchronous>, transform_indices = @transform_2, window_bounds = array<i64: 7, 128>}, {pipeline_mode = #tpu.pipeline_mode<synchronous>, transform_indices = @transform_3, window_bounds = array<i64: 1, 128>}, {pipeline_mode = #tpu.pipeline_mode<synchronous>, transform_indices = @transform_4, window_bounds = array<i64: 128, 128>}, {pipeline_mode = #tpu.pipeline_mode<synchronous>, transform_indices = @transform_5, window_bounds = array<i64: 1, 128>}, {transform_indices = @transform_6, window_bounds = array<i64: 1, 8, 128>}]} {
    %c8_i32 = arith.constant 8 : i32
    %0 = arith.muli %arg0, %c8_i32 : i32
    %c8_i32_0 = arith.constant 8 : i32
    %1 = arith.muli %arg1, %c8_i32_0 : i32
    %2 = arith.addi %0, %1 : i32
    %c0_i32 = arith.constant 0 : i32
    %c4_i32 = arith.constant 4 : i32
    %3 = arith.addi %c0_i32, %c4_i32 : i32
    %c1_i32 = arith.constant 1 : i32
    scf.for %arg11 = %c0_i32 to %3 step %c1_i32  : i32 {
      %c1_i32_17 = arith.constant 1 : i32
      %31 = arith.muli %arg11, %c1_i32_17 : i32
      %c0_i32_18 = arith.constant 0 : i32
      %32 = arith.addi %c0_i32_18, %31 : i32
      %c0_i32_19 = arith.constant 0 : i32
      %c8_i32_20 = arith.constant 8 : i32
      %33 = arith.addi %c0_i32_19, %c8_i32_20 : i32
      %c1_i32_21 = arith.constant 1 : i32
      scf.for %arg12 = %c0_i32_19 to %33 step %c1_i32_21  : i32 {
        %c1_i32_23 = arith.constant 1 : i32
        %34 = arith.muli %arg12, %c1_i32_23 : i32
        %c0_i32_24 = arith.constant 0 : i32
        %35 = arith.addi %c0_i32_24, %34 : i32
        %36 = arith.addi %2, %35 : i32
        %c4_i32_25 = arith.constant 4 : i32
        %37 = arith.muli %36, %c4_i32_25 : i32
        %38 = arith.addi %37, %32 : i32
        %39 = arith.index_cast %38 : i32 to index
        %40 = memref.load %arg2[%39] : memref<64xi32, #tpu.memory_space<smem>>
        %c0_26 = arith.constant 0 : index
        %41 = arith.index_cast %40 : i32 to index
        %c0_27 = arith.constant 0 : index
        %42 = vector.load %arg3[%c0_26, %41, %c0_27] : memref<1x16x7xf32, #tpu.memory_space<vmem>>, vector<1x1x7xf32>
        %43 = vector.shape_cast %42 : vector<1x1x7xf32> to vector<1x7xf32>
        %c0_28 = arith.constant 0 : index
        %44 = arith.index_cast %35 : i32 to index
        %c0_29 = arith.constant 0 : index
        %45 = vector.load %arg4[%c0_28, %44, %c0_29] : memref<1x8x7xf32, #tpu.memory_space<vmem>>, vector<1x1x7xf32>
        %46 = vector.shape_cast %45 : vector<1x1x7xf32> to vector<1x7xf32>
        %47 = arith.subf %43, %46 : vector<1x7xf32>
        %c8_i32_30 = arith.constant 8 : i32
        %48 = arith.muli %32, %c8_i32_30 : i32
        %49 = arith.addi %48, %35 : i32
        %50 = arith.index_cast %49 : i32 to index
        %c0_31 = arith.constant 0 : index
        %51 = vector.load %arg10[%50, %c0_31] : memref<32x7xf32, #tpu.memory_space<vmem>>, vector<1x7xf32>
        tpu.vector_store %arg10[%50, %c0_31], %47 {strides = array<i32>} : memref<32x7xf32, #tpu.memory_space<vmem>>, vector<1x7xf32>,
      }
      %c8_i32_22 = arith.constant 8 : i32
    }
    %c4_i32_1 = arith.constant 4 : i32
    %c0 = arith.constant 0 : index
    %c0_2 = arith.constant 0 : index
    %4 = vector.load %arg10[%c0, %c0_2] : memref<32x7xf32, #tpu.memory_space<vmem>>, vector<32x7xf32>
    %c0_3 = arith.constant 0 : index
    %c0_4 = arith.constant 0 : index
    %5 = vector.load %arg5[%c0_3, %c0_4] : memref<7x128xbf16, #tpu.memory_space<vmem>>, vector<7x128xbf16>
    %c0_5 = arith.constant 0 : index
    %c0_6 = arith.constant 0 : index
    %6 = vector.load %arg6[%c0_5, %c0_6] : memref<1x128xf32, #tpu.memory_space<vmem>>, vector<1x128xf32>
    %7 = arith.truncf %4 : vector<32x7xf32> to vector<32x7xbf16>
    %cst = arith.constant dense<0.000000e+00> : vector<32x128xf32>
    %8 = tpu.matmul %7, %5, %cst {dimension_numbers = #tpu.dot_dimension_numbers<[1], [0], [0], [1], [0, 0, 1, 1], [], []>} : vector<32x7xbf16>, vector<7x128xbf16>, vector<32x128xf32> -> vector<32x128xf32>
    %9 = vector.broadcast %6 : vector<1x128xf32> to vector<32x128xf32>
    %10 = arith.addf %8, %9 : vector<32x128xf32>
    %cst_7 = arith.constant 0.000000e+00 : f32
    %11 = vector.broadcast %cst_7 : f32 to vector<32x128xf32>
    %12 = arith.maximumf %10, %11 : vector<32x128xf32>
    %c0_8 = arith.constant 0 : index
    %c0_9 = arith.constant 0 : index
    %13 = vector.load %arg7[%c0_8, %c0_9] : memref<128x128xbf16, #tpu.memory_space<vmem>>, vector<128x128xbf16>
    %c0_10 = arith.constant 0 : index
    %c0_11 = arith.constant 0 : index
    %14 = vector.load %arg8[%c0_10, %c0_11] : memref<1x128xf32, #tpu.memory_space<vmem>>, vector<1x128xf32>
    %15 = arith.truncf %12 : vector<32x128xf32> to vector<32x128xbf16>
    %cst_12 = arith.constant dense<0.000000e+00> : vector<32x128xf32>
    %16 = tpu.matmul %15, %13, %cst_12 {dimension_numbers = #tpu.dot_dimension_numbers<[1], [0], [0], [1], [0, 0, 1, 1], [], []>} : vector<32x128xbf16>, vector<128x128xbf16>, vector<32x128xf32> -> vector<32x128xf32>
    %17 = vector.broadcast %14 : vector<1x128xf32> to vector<32x128xf32>
    %18 = arith.addf %16, %17 : vector<32x128xf32>
    %cst_13 = arith.constant 0.000000e+00 : f32
    %19 = vector.broadcast %cst_13 : f32 to vector<32x128xf32>
    %20 = arith.maximumf %18, %19 : vector<32x128xf32>
    %21 = vector.extract_strided_slice %20 {offsets = [0, 0], sizes = [8, 128], strides = [1, 1]} : vector<32x128xf32> to vector<8x128xf32>
    %22 = vector.extract_strided_slice %20 {offsets = [8, 0], sizes = [8, 128], strides = [1, 1]} : vector<32x128xf32> to vector<8x128xf32>
    %23 = arith.maximumf %21, %22 : vector<8x128xf32>
    %24 = vector.extract_strided_slice %20 {offsets = [16, 0], sizes = [8, 128], strides = [1, 1]} : vector<32x128xf32> to vector<8x128xf32>
    %25 = arith.maximumf %23, %24 : vector<8x128xf32>
    %26 = vector.extract_strided_slice %20 {offsets = [24, 0], sizes = [8, 128], strides = [1, 1]} : vector<32x128xf32> to vector<8x128xf32>
    %27 = arith.maximumf %25, %26 : vector<8x128xf32>
    %c0_14 = arith.constant 0 : index
    %c0_15 = arith.constant 0 : index
    %c0_16 = arith.constant 0 : index
    %28 = vector.load %arg9[%c0_14, %c0_15, %c0_16] : memref<1x8x128xf32, #tpu.memory_space<vmem>>, vector<1x8x128xf32>
    %29 = vector.shape_cast %28 : vector<1x8x128xf32> to vector<8x128xf32>
    %30 = vector.shape_cast %27 : vector<8x128xf32> to vector<1x8x128xf32>
    tpu.vector_store %arg9[%c0_14, %c0_15, %c0_16], %30 {strides = array<i32>} : memref<1x8x128xf32, #tpu.memory_space<vmem>>, vector<1x8x128xf32>,
    return
  }
  func.func @transform_0(%arg0: i32, %arg1: i32, %arg2: memref<64xi32, #tpu.memory_space<smem>>) -> (i32, i32, i32) {
    %c0_i32 = arith.constant 0 : i32
    %c0_i32_0 = arith.constant 0 : i32
    %c0_i32_1 = arith.constant 0 : i32
    return %arg0, %c0_i32, %c0_i32_0 : i32, i32, i32
  }
  func.func @transform_1(%arg0: i32, %arg1: i32, %arg2: memref<64xi32, #tpu.memory_space<smem>>) -> (i32, i32, i32) {
    %c0_i32 = arith.constant 0 : i32
    %c0_i32_0 = arith.constant 0 : i32
    return %arg0, %arg1, %c0_i32 : i32, i32, i32
  }
  func.func @transform_2(%arg0: i32, %arg1: i32, %arg2: memref<64xi32, #tpu.memory_space<smem>>) -> (i32, i32) {
    %c0_i32 = arith.constant 0 : i32
    %c0_i32_0 = arith.constant 0 : i32
    %c0_i32_1 = arith.constant 0 : i32
    return %c0_i32, %c0_i32_0 : i32, i32
  }
  func.func @transform_3(%arg0: i32, %arg1: i32, %arg2: memref<64xi32, #tpu.memory_space<smem>>) -> (i32, i32) {
    %c0_i32 = arith.constant 0 : i32
    %c0_i32_0 = arith.constant 0 : i32
    %c0_i32_1 = arith.constant 0 : i32
    return %c0_i32, %c0_i32_0 : i32, i32
  }
  func.func @transform_4(%arg0: i32, %arg1: i32, %arg2: memref<64xi32, #tpu.memory_space<smem>>) -> (i32, i32) {
    %c0_i32 = arith.constant 0 : i32
    %c0_i32_0 = arith.constant 0 : i32
    %c0_i32_1 = arith.constant 0 : i32
    return %c0_i32, %c0_i32_0 : i32, i32
  }
  func.func @transform_5(%arg0: i32, %arg1: i32, %arg2: memref<64xi32, #tpu.memory_space<smem>>) -> (i32, i32) {
    %c0_i32 = arith.constant 0 : i32
    %c0_i32_0 = arith.constant 0 : i32
    %c0_i32_1 = arith.constant 0 : i32
    return %c0_i32, %c0_i32_0 : i32, i32
  }
  func.func @transform_6(%arg0: i32, %arg1: i32, %arg2: memref<64xi32, #tpu.memory_space<smem>>) -> (i32, i32, i32) {
    %c0_i32 = arith.constant 0 : i32
    %c0_i32_0 = arith.constant 0 : i32
    return %arg0, %arg1, %c0_i32 : i32, i32, i32
  }
}

</mosaic_0001>

<llo_original>
// kernel: tpu_custom_call.1
$region0: #{tpu_custom_call.1}
  #allocation0 [shape = 'u32[]', space=smem, size = 0x4, offset = 0x4, fixed_abs, tag = 'smem constant byte address 0x4 - core index']
  #allocation1 [shape = 'u32[72,128]{1,0:T(1,128)}', space=vmem, size = 0x9000, scoped, tag = 'internal scratch']
  #allocation2 [shape = 'f32[32,7]{1,0:T(8,128)}', space=vmem, size = 0x4000, scoped, tag = 'scratch operand']
  #allocation3 [shape = 's32[1]{0}', space=sflag, size = 0x4, scoped, tag = 'scoped memory for tpu_custom_call.1']
  #allocation4 [shape = 'u8[512]{0}', space=smem, size = 0x200, scoped, tag = 'prefetched SMEM operand 0']
  %s0 = inlined_call_operand.vmem [shape: s32[64], index: 0, kind: input, shape index: {}]
  %s1 = inlined_call_operand.vmem [shape: f32[2,16,7], index: 1, kind: input, shape index: {}]
  %s2 = inlined_call_operand.vmem [shape: f32[2,8,7], index: 2, kind: input, shape index: {}]
  %s3 = inlined_call_operand.vmem [shape: bf16[7,128], index: 3, kind: input, shape index: {}]
  %s4 = inlined_call_operand.vmem [shape: f32[1,128], index: 4, kind: input, shape index: {}]
  %s5 = inlined_call_operand.hbm [shape: bf16[128,128], index: 5, kind: input, shape index: {}]
  %s6 = inlined_call_operand.vmem [shape: f32[1,128], index: 6, kind: input, shape index: {}]
  %s7 = inlined_call_operand.hbm [shape: f32[2,8,128], index: 7, kind: output, shape index: {}]
  %s8 = sld [smem:[#allocation0]]
  $region75: #{tpu_custom_call.1} parent=0
    _
  %s10 = ssub.s32 1, %s8
  %s11 = scalar_select 0, %s10, %s8
  %s13 = sshll.u32 %s0, 4
  %s14 = int_to_ptr.vmem [resolvable:$true] %s13
  %16 = dma.vmem_to_smem %s14, 16, [#allocation4], [#allocation3]
  %18 = dma.done [#allocation3], 16
  %19 = sfence
  $region1: #{tpu_custom_call.1} parent=0
    #allocation5 [shape = 'u8[32768]{0}', space=vmem, size = 0x8000, scoped, tag = 'input window, operand 5, single buffered']
    #allocation6 [shape = 's32[2]{0}', space=sflag, size = 0x8, scoped, tag = 'scoped memory for tpu_custom_call.1']
    #allocation7 [shape = 's32[2]{0}', space=sflag, size = 0x8, scoped, tag = 'scoped memory for tpu_custom_call.1']
    #allocation8 [shape = 'u8[8192]{0}', space=vmem, size = 0x2000, scoped, tag = 'output window, operand 0']
    %20 = vsyncpa [#allocation6], 0
    %21 = vsyncpa [#allocation7], 0
    %s22 = scalar_lea.sflag [#allocation7], 1
    %23 = vsyncpa %s22, 0
    loop: start=0, step=1, limit=4
    $region2: #{tpu_custom_call.1} parent=1 // loop_pre_header
      _
    $region3: #{tpu_custom_call.1} parent=1 // loop_header
      %s25 = sphi 0, %s29
      %p26 = scmp.ge.s32.totalorder %s25, 4
      %s32 = sphi 0, %s44
      %s33 = sphi 0, %s40
      %s34 = sphi 0, %s32
      %s35 = sphi 0, %s33
      %s36 = sphi 0, %s34
      %s37 = sphi 0, %s35
      %s47 = sphi 0, %s49
      %s50 = sphi 0, %s47
      %s51 = sphi 0, %s50
      %s67 = sphi 0, %s51
      %s75 = sphi 0, %s77
      %s78 = sphi 0, %s75
      %s79 = sphi 0, %s78
      %s95 = sphi 0, %s79
      %s99 = sphi 0, %s99
      %s101 = sphi 0, %s99
      %s102 = sphi 0, %s101
      %s116 = sphi 0, %s102
      %s120 = sphi 0, %s120
      %s122 = sphi 0, %s120
      %s123 = sphi 0, %s122
      %s137 = sphi 0, %s123
      %s141 = sphi 0, %s141
      %s143 = sphi 0, %s141
      %s144 = sphi 0, %s143
      %s158 = sphi 0, %s144
      %s162 = sphi 0, %s162
      %s164 = sphi 0, %s162
      %s165 = sphi 0, %s164
      %s179 = sphi 0, %s165
      %s187 = sphi 0, %s189
      %s190 = sphi 0, %s187
      %s191 = sphi 0, %s190
      %s207 = sphi 0, %s191
    $region4: #{tpu_custom_call.1} parent=1 // loop_header_branch
      %28 = sbr.rel (%p26) target = $region8
    $region5: #{tpu_custom_call.1} parent=1 // loop_body
      %s30 = ssub.s32 %s25, 1
      %s31 = ssub.s32 %s25, 2
      %s38 = sadd.s32 1, %s33
      %p39 = scmp.ge.s32.totalorder %s38, 1
      %s40 = scalar_select %p39, 0, %s38
      %s41 = sadd.s32 1, %s32
      %s42 = scalar_select %p39, %s41, %s32
      %p43 = scmp.ge.s32.totalorder %s42, 2
      %s44 = scalar_select %p43, 0, %s42
      %s45 = ssub.s32 %s32, %s44
      %p46 = scmp.eq.s32.totalorder %s45, 0
      %s48 = sadd.s32 %s47, 1
      %s49 = scalar_select %p46, %s47, %s48
      %p52 = pneg %p46
      %p53 = scmp.eq.s32.totalorder %s25, 1
      %p54 = por %p52, %p53
      %p55 = scmp.ne.s32.totalorder %s47, %s50
      %p56 = scmp.eq.s32.totalorder %s25, 0
      %p57 = por %p55, %p56
      %p58 = scmp.ne.s32.totalorder %s47, %s50
      %p59 = scmp.eq.s32.totalorder %s30, 1
      %p60 = por %p58, %p59
      %p61 = scmp.ne.s32.totalorder %s50, %s51
      %p62 = scmp.eq.s32.totalorder %s30, 0
      %p63 = por %p61, %p62
      %p64 = scmp.ne.s32.totalorder %s50, %s51
      %p65 = scmp.eq.s32.totalorder %s31, 1
      %p66 = por %p64, %p65
      %p68 = scmp.ne.s32.totalorder %s51, %s67
      %p69 = scmp.eq.s32.totalorder %s31, 0
      %p70 = por %p68, %p69
      %s71 = ssub.s32 %s32, %s44
      %s72 = ssub.s32 %s33, %s40
      %s73 = sor.u32 %s71, %s72
      %p74 = scmp.eq.s32.totalorder %s73, 0
      %s76 = sadd.s32 %s75, 1
      %s77 = scalar_select %p74, %s75, %s76
      %p80 = pneg %p74
      %p81 = scmp.eq.s32.totalorder %s25, 1
      %p82 = por %p80, %p81
      %p83 = scmp.ne.s32.totalorder %s75, %s78
      %p84 = scmp.eq.s32.totalorder %s25, 0
      %p85 = por %p83, %p84
      %p86 = scmp.ne.s32.totalorder %s75, %s78
      %p87 = scmp.eq.s32.totalorder %s30, 1
      %p88 = por %p86, %p87
      %p89 = scmp.ne.s32.totalorder %s78, %s79
      %p90 = scmp.eq.s32.totalorder %s30, 0
      %p91 = por %p89, %p90
      %p92 = scmp.ne.s32.totalorder %s78, %s79
      %p93 = scmp.eq.s32.totalorder %s31, 1
      %p94 = por %p92, %p93
      %p96 = scmp.ne.s32.totalorder %s79, %s95
      %p97 = scmp.eq.s32.totalorder %s31, 0
      %p98 = por %p96, %p97
      %s100 = sadd.s32 %s99, 1
      %p103 = scmp.eq.s32.totalorder %s25, 1
      %p104 = scmp.ne.s32.totalorder %s99, %s101
      %p105 = scmp.eq.s32.totalorder %s25, 0
      %p106 = por %p104, %p105
      %p107 = scmp.ne.s32.totalorder %s99, %s101
      %p108 = scmp.eq.s32.totalorder %s30, 1
      %p109 = por %p107, %p108
      %p110 = scmp.ne.s32.totalorder %s101, %s102
      %p111 = scmp.eq.s32.totalorder %s30, 0
      %p112 = por %p110, %p111
      %p113 = scmp.ne.s32.totalorder %s101, %s102
      %p114 = scmp.eq.s32.totalorder %s31, 1
      %p115 = por %p113, %p114
      %p117 = scmp.ne.s32.totalorder %s102, %s116
      %p118 = scmp.eq.s32.totalorder %s31, 0
      %p119 = por %p117, %p118
      %s121 = sadd.s32 %s120, 1
      %p124 = scmp.eq.s32.totalorder %s25, 1
      %p125 = scmp.ne.s32.totalorder %s120, %s122
      %p126 = scmp.eq.s32.totalorder %s25, 0
      %p127 = por %p125, %p126
      %p128 = scmp.ne.s32.totalorder %s120, %s122
      %p129 = scmp.eq.s32.totalorder %s30, 1
      %p130 = por %p128, %p129
      %p131 = scmp.ne.s32.totalorder %s122, %s123
      %p132 = scmp.eq.s32.totalorder %s30, 0
      %p133 = por %p131, %p132
      %p134 = scmp.ne.s32.totalorder %s122, %s123
      %p135 = scmp.eq.s32.totalorder %s31, 1
      %p136 = por %p134, %p135
      %p138 = scmp.ne.s32.totalorder %s123, %s137
      %p139 = scmp.eq.s32.totalorder %s31, 0
      %p140 = por %p138, %p139
      %s142 = sadd.s32 %s141, 1
      %p145 = scmp.eq.s32.totalorder %s25, 1
      %p146 = scmp.ne.s32.totalorder %s141, %s143
      %p147 = scmp.eq.s32.totalorder %s25, 0
      %p148 = por %p146, %p147
      %p149 = scmp.ne.s32.totalorder %s141, %s143
      %p150 = scmp.eq.s32.totalorder %s30, 1
      %p151 = por %p149, %p150
      %p152 = scmp.ne.s32.totalorder %s143, %s144
      %p153 = scmp.eq.s32.totalorder %s30, 0
      %p154 = por %p152, %p153
      %p155 = scmp.ne.s32.totalorder %s143, %s144
      %p156 = scmp.eq.s32.totalorder %s31, 1
      %p157 = por %p155, %p156
      %p159 = scmp.ne.s32.totalorder %s144, %s158
      %p160 = scmp.eq.s32.totalorder %s31, 0
      %p161 = por %p159, %p160
      %s163 = sadd.s32 %s162, 1
      %p166 = scmp.eq.s32.totalorder %s25, 1
      %p167 = scmp.ne.s32.totalorder %s162, %s164
      %p168 = scmp.eq.s32.totalorder %s25, 0
      %p169 = por %p167, %p168
      %p170 = scmp.ne.s32.totalorder %s162, %s164
      %p171 = scmp.eq.s32.totalorder %s30, 1
      %p172 = por %p170, %p171
      %p173 = scmp.ne.s32.totalorder %s164, %s165
      %p174 = scmp.eq.s32.totalorder %s30, 0
      %p175 = por %p173, %p174
      %p176 = scmp.ne.s32.totalorder %s164, %s165
      %p177 = scmp.eq.s32.totalorder %s31, 1
      %p178 = por %p176, %p177
      %p180 = scmp.ne.s32.totalorder %s165, %s179
      %p181 = scmp.eq.s32.totalorder %s31, 0
      %p182 = por %p180, %p181
      %s183 = ssub.s32 %s32, %s44
      %s184 = ssub.s32 %s33, %s40
      %s185 = sor.u32 %s183, %s184
      %p186 = scmp.eq.s32.totalorder %s185, 0
      %s188 = sadd.s32 %s187, 1
      %s189 = scalar_select %p186, %s187, %s188
      %p192 = pneg %p186
      %p193 = scmp.eq.s32.totalorder %s25, 1
      %p194 = por %p192, %p193
      %p195 = scmp.ne.s32.totalorder %s187, %s190
      %p196 = scmp.eq.s32.totalorder %s25, 0
      %p197 = por %p195, %p196
      %p198 = scmp.ne.s32.totalorder %s187, %s190
      %p199 = scmp.eq.s32.totalorder %s30, 1
      %p200 = por %p198, %p199
      %p201 = scmp.ne.s32.totalorder %s190, %s191
      %p202 = scmp.eq.s32.totalorder %s30, 0
      %p203 = por %p201, %p202
      %p204 = scmp.ne.s32.totalorder %s190, %s191
      %p205 = scmp.eq.s32.totalorder %s31, 1
      %p206 = por %p204, %p205
      %p208 = scmp.ne.s32.totalorder %s191, %s207
      %p209 = scmp.eq.s32.totalorder %s31, 0
      %p210 = por %p208, %p209
      %p211 = scmp.le.s32.totalorder 1, %s25
      %p212 = scmp.lt.s32.totalorder %s25, 3
      %p213 = pnand %p211, %p212
      %p214 = pneg %p213
      // Predicated region
      $region9: #{tpu_custom_call.1} parent=5 // pred_check
        _
      $region10: #{tpu_custom_call.1} parent=5 // pred_check_branch
        %216 = sbr.rel (%p213) target = $region12
      $region11: #{tpu_custom_call.1} parent=5 // pred_region
        %s217 = ssub.s32 %s25, 1
        // Predicated region
        $region13: #{tpu_custom_call.1} parent=11 // pred_check
          %p218 = pneg %p112
        $region14: #{tpu_custom_call.1} parent=11 // pred_check_branch
          %220 = sbr.rel (%p218) target = $region16
        $region15: #{tpu_custom_call.1} parent=11 // pred_region
          _
        $region16: #{tpu_custom_call.1} parent=11 // pred_fallthru
          _
        // Predicated region
        $region17: #{tpu_custom_call.1} parent=11 // pred_check
          %p221 = pneg %p133
        $region18: #{tpu_custom_call.1} parent=11 // pred_check_branch
          %223 = sbr.rel (%p221) target = $region20
        $region19: #{tpu_custom_call.1} parent=11 // pred_region
          _
        $region20: #{tpu_custom_call.1} parent=11 // pred_fallthru
          _
        // Predicated region
        $region21: #{tpu_custom_call.1} parent=11 // pred_check
          %p224 = pneg %p154
        $region22: #{tpu_custom_call.1} parent=11 // pred_check_branch
          %226 = sbr.rel (%p224) target = $region24
        $region23: #{tpu_custom_call.1} parent=11 // pred_region
          %228 = vsyncadd [#allocation6], 0
          %s229 = sshll.u32 %s5, 4
          %s230 = int_to_ptr.hbm [resolvable:$true] %s229
          %s231 = sshll.u32 [#allocation5], 4
          %s232 = int_to_ptr.vmem [resolvable:$true] %s231
          %237 = dma.hbm_to_vmem [thread:$0]  %s230, 1024, %s232, [#allocation6], 64, 64, 4
        $region24: #{tpu_custom_call.1} parent=11 // pred_fallthru
          _
        // Predicated region
        $region25: #{tpu_custom_call.1} parent=11 // pred_check
          %p238 = pneg %p175
        $region26: #{tpu_custom_call.1} parent=11 // pred_check_branch
          %240 = sbr.rel (%p238) target = $region28
        $region27: #{tpu_custom_call.1} parent=11 // pred_region
          _
        $region28: #{tpu_custom_call.1} parent=11 // pred_fallthru
          _
      $region12: #{tpu_custom_call.1} parent=5 // pred_fallthru
        _
      %p241 = scmp.lt.s32.totalorder %s25, 2
      // Predicated region
      $region29: #{tpu_custom_call.1} parent=5 // pred_check
        %p242 = pneg %p241
      $region30: #{tpu_custom_call.1} parent=5 // pred_check_branch
        %244 = sbr.rel (%p242) target = $region32
      $region31: #{tpu_custom_call.1} parent=5 // pred_region
        // Predicated region
        $region33: #{tpu_custom_call.1} parent=31 // pred_check
          %p245 = pneg %p57
        $region34: #{tpu_custom_call.1} parent=31 // pred_check_branch
          %247 = sbr.rel (%p245) target = $region36
        $region35: #{tpu_custom_call.1} parent=31 // pred_region
          %p248 = scmp.lt.s32.totalorder %s32, 1
          %s249 = scalar_select %p248, %s32, 1
          %s250 = smul.addr %s249, 2
          %s251 = smul.addr %s250, 8
          %s252 = scalar_lea.vmem %s1, %s251
        $region36: #{tpu_custom_call.1} parent=31 // pred_fallthru
          _
        // Predicated region
        $region37: #{tpu_custom_call.1} parent=31 // pred_check
          %p253 = pneg %p85
        $region38: #{tpu_custom_call.1} parent=31 // pred_check_branch
          %255 = sbr.rel (%p253) target = $region40
        $region39: #{tpu_custom_call.1} parent=31 // pred_region
          %p256 = scmp.lt.s32.totalorder %s32, 1
          %s257 = scalar_select %p256, %s32, 1
          %p258 = scmp.lt.s32.totalorder %s33, 0
          %s259 = scalar_select %p258, %s33, 0
          %s260 = sadd.s32 %s259, %s257
          %s261 = smul.addr %s260, 8
          %s262 = scalar_lea.vmem %s2, %s261
        $region40: #{tpu_custom_call.1} parent=31 // pred_fallthru
          _
      $region32: #{tpu_custom_call.1} parent=5 // pred_fallthru
        _
      %p263 = scmp.le.s32.totalorder 1, %s25
      %p264 = scmp.lt.s32.totalorder %s25, 3
      %p265 = pnand %p263, %p264
      %p266 = pneg %p265
      // Predicated region
      $region41: #{tpu_custom_call.1} parent=5 // pred_check
        _
      $region42: #{tpu_custom_call.1} parent=5 // pred_check_branch
        %268 = sbr.rel (%p265) target = $region44
      $region43: #{tpu_custom_call.1} parent=5 // pred_region
        %s269 = ssub.s32 %s25, 1
        // Predicated region
        $region45: #{tpu_custom_call.1} parent=43 // pred_check
          %p270 = pneg %p154
        $region46: #{tpu_custom_call.1} parent=43 // pred_check_branch
          %272 = sbr.rel (%p270) target = $region48
        $region47: #{tpu_custom_call.1} parent=43 // pred_region
          %274 = dma.done [#allocation6], 1024
        $region48: #{tpu_custom_call.1} parent=43 // pred_fallthru
          _
        %p275 = scmp.lt.s32.totalorder %s34, 1
        %s276 = scalar_select %p275, %s34, 1
        %s277 = smul.addr %s276, 2
        %s278 = smul.addr %s277, 8
        %s279 = scalar_lea.vmem %s1, %s278
        %p280 = pneg %p63
        %p281 = pneg %p60
        %p282 = scmp.lt.s32.totalorder %s34, 1
        %s283 = scalar_select %p282, %s34, 1
        %p284 = scmp.lt.s32.totalorder %s35, 0
        %s285 = scalar_select %p284, %s35, 0
        %s286 = sadd.s32 %s285, %s283
        %s287 = smul.addr %s286, 8
        %s288 = scalar_lea.vmem %s2, %s287
        %p289 = pneg %p91
        %p290 = pneg %p88
        %p291 = pneg %p112
        %p292 = pneg %p109
        %p293 = pneg %p133
        %p294 = pneg %p130
        %p295 = pneg %p154
        %p296 = pneg %p151
        %p297 = pneg %p175
        %p298 = pneg %p172
        %p299 = pneg %p203
        %p300 = pneg %p200
        %s301 = sand.u32 %s190, 1
        %s302 = scalar_lea.sflag [#allocation7], %s301
        %s303 = sand.u32 %s190, 1
        %s304 = smul.addr %s303, 8
        %s305 = scalar_lea.vmem [#allocation8], %s304
        %p306 = scmp.lt.s32.totalorder %s34, 1
        %s307 = scalar_select %p306, %s34, 1
        %s308 = smul.addr %s307, 2
        %s309 = smul.addr %s308, 8
        %s310 = scalar_lea.vmem %s1, %s309
        %p311 = scmp.lt.s32.totalorder %s34, 1
        %s312 = scalar_select %p311, %s34, 1
        %p313 = scmp.lt.s32.totalorder %s35, 0
        %s314 = scalar_select %p313, %s35, 0
        %s315 = sadd.s32 %s314, %s312
        %s316 = smul.addr %s315, 8
        %s317 = scalar_lea.vmem %s2, %s316
        %s319 = smul.u32 %s34, 8
        %s320 = smul.u32 %s35, 8
        %s321 = sadd.s32 %s319, %s320
        loop: start=0, step=1, limit=4
        $region49: #{tpu_custom_call.1} parent=43 // loop_pre_header
          _
        $region50: #{tpu_custom_call.1} parent=43 // loop_header
          %s323 = sphi 0, %s327
          %p324 = scmp.ge.s32.totalorder %s323, 4
        $region51: #{tpu_custom_call.1} parent=43 // loop_header_branch
          %326 = sbr.rel (%p324) target = $region55
        $region52: #{tpu_custom_call.1} parent=43 // loop_body
          loop: start=0, step=1, limit=8
          $region56: #{tpu_custom_call.1} parent=52 // loop_pre_header
            _
          $region57: #{tpu_custom_call.1} parent=52 // loop_header
            %s329 = sphi 0, %s333
            %p330 = scmp.ge.s32.totalorder %s329, 8
          $region58: #{tpu_custom_call.1} parent=52 // loop_header_branch
            %332 = sbr.rel (%p330) target = $region62
          $region59: #{tpu_custom_call.1} parent=52 // loop_body
            %s334 = sadd.s32 %s321, %s329
            %s335 = smul.u32 %s334, 4
            %s336 = sadd.s32 %s335, %s323
            %s337 = sld [smem:[#allocation4 + %s336]]
            %s338 = scalar_lea.vmem %s310, %s337
            %v339 = vld [vmem:[%s338] sm:$0x1]
            %s340 = scalar_lea.vmem %s317, %s329
            %v341 = vld [vmem:[%s340] sm:$0x1]
            %v342 = vsub.f32 %v339, %v341
            %s343 = smul.u32 %s323, 8
            %s344 = sadd.s32 %s343, %s329
            %s345 = scalar_lea.vmem [#allocation2], %s344
            %vm346 = vcmask 49152
            %347 = vst.msk [vmem:[%s345] sm:$0x1] %vm346, %v342
          $region60: #{tpu_custom_call.1} parent=52 // loop_footer
            %s333 = sadd.s32 1, %s329
          $region61: #{tpu_custom_call.1} parent=52 // loop_footer_branch
            %328 = sbr.rel target = $region57
          $region62: #{tpu_custom_call.1} parent=52 // loop_exit
            _
        $region53: #{tpu_custom_call.1} parent=43 // loop_footer
          %s327 = sadd.s32 1, %s323
        $region54: #{tpu_custom_call.1} parent=43 // loop_footer_branch
          %322 = sbr.rel target = $region50
        $region55: #{tpu_custom_call.1} parent=43 // loop_exit
          _
        %v348 = vld [vmem:[#allocation2] sm:$0xff]
        %v349 = vld [vmem:[#allocation2 + $0x8] sm:$0xff]
        %v350 = vld [vmem:[#allocation2 + $0x10] sm:$0xff]
        %v351 = vld [vmem:[#allocation2 + $0x18] sm:$0xff]
        %v352 = vld [vmem:[%s3] sm:$0xf]
        %v353 = vld [vmem:[%s4] sm:$0x1]
        %v354 = vpack.c.bf16 %v349, %v348
        %v355 = vpack.c.bf16 %v351, %v350
        %v357 = vperm.slane %v353, 0
        %vm359 = vcmask 56320
        %v361 = vsel %vm359, %v354, 0
        %v364 = vsel %vm359, %v355, 0
        %vm366 = vcmask 1042432
        %vm367 = vcmask 1043456
        %v368 = vsel %vm366, 4294967295, 65535
        %v369 = vsel %vm367, %v368, 0
        %v371 = vand.u32 %v352, %v369
        %373 = vmatpush.bf16.msra.mxu0 0
        %374 = vmatpush.bf16.msra.mxu0 0
        %375 = vmatpush.bf16.msra.mxu0 0
        %376 = vmatpush.bf16.msra.mxu0 0
        %377 = vmatpush.bf16.msra.mxu0 0
        %378 = vmatpush.bf16.msra.mxu0 0
        %379 = vmatpush.bf16.msra.mxu0 0
        %380 = vmatpush.bf16.msra.mxu0 %v371
        %381 = vmatmul.bf16.gmra.mxu0 %v361
        %v382 = vpop.f32.mrf.mxu0
        %v383 = vadd.f32 %v357, %v382
        %v384 = vpop.f32.mrf.mxu0
        %v385 = vadd.f32 %v357, %v384
        %386 = vmatmul.bf16.gmra.mxu0 %v364
        %v387 = vpop.f32.mrf.mxu0
        %v388 = vadd.f32 %v357, %v387
        %v389 = vpop.f32.mrf.mxu0
        %v390 = vadd.f32 %v357, %v389
        %391 = vdwg.mxu0
        %v392 = vmax.f32 %v383, 0.0
        %v393 = vmax.f32 %v385, 0.0
        %v394 = vmax.f32 %v388, 0.0
        %v395 = vmax.f32 %v390, 0.0
        %v396 = vld [vmem:[#allocation5] sm:$0xf]
        %v397 = vld [vmem:[#allocation5 + $0x4] sm:$0xf]
        %v398 = vld [vmem:[#allocation5 + $0x8] sm:$0xf]
        %v399 = vld [vmem:[#allocation5 + $0xc] sm:$0xf]
        %v400 = vld [vmem:[#allocation5 + $0x10] sm:$0xf]
        %v401 = vld [vmem:[#allocation5 + $0x14] sm:$0xf]
        %v402 = vld [vmem:[#allocation5 + $0x18] sm:$0xf]
        %v403 = vld [vmem:[#allocation5 + $0x1c] sm:$0xf]
        %v404 = vld [vmem:[#allocation5 + $0x20] sm:$0xf]
        %v405 = vld [vmem:[#allocation5 + $0x24] sm:$0xf]
        %v406 = vld [vmem:[#allocation5 + $0x28] sm:$0xf]
        %v407 = vld [vmem:[#allocation5 + $0x2c] sm:$0xf]
        %v408 = vld [vmem:[#allocation5 + $0x30] sm:$0xf]
        %v409 = vld [vmem:[#allocation5 + $0x34] sm:$0xf]
        %v410 = vld [vmem:[#allocation5 + $0x38] sm:$0xf]
        %v411 = vld [vmem:[#allocation5 + $0x3c] sm:$0xf]
        %v412 = vld [vmem:[%s6] sm:$0x1]
        %v413 = vpack.c.bf16 %v393, %v392
        %v414 = vpack.c.bf16 %v395, %v394
        %v416 = vperm.slane %v412, 0
        %v434 = vunpack.c.l.b16 %v396
        %v435 = vunpack.c.l.b16 %v397
        %v436 = vunpack.c.l.b16 %v398
        %v437 = vunpack.c.l.b16 %v399
        %v438 = vunpack.c.l.b16 %v400
        %v439 = vunpack.c.l.b16 %v401
        %v440 = vunpack.c.l.b16 %v402
        %v441 = vunpack.c.l.b16 %v403
        %v442 = vunpack.c.l.b16 %v404
        %v443 = vunpack.c.l.b16 %v405
        %v444 = vunpack.c.l.b16 %v406
        %v445 = vunpack.c.l.b16 %v407
        %v446 = vunpack.c.l.b16 %v408
        %v447 = vunpack.c.l.b16 %v409
        %v448 = vunpack.c.l.b16 %v410
        %v449 = vunpack.c.l.b16 %v411
        %v450 = vpack.c.b16 %v435, %v434
        %v451 = vpack.c.b16 %v437, %v436
        %v452 = vpack.c.b16 %v439, %v438
        %v453 = vpack.c.b16 %v441, %v440
        %v454 = vpack.c.b16 %v443, %v442
        %v455 = vpack.c.b16 %v445, %v444
        %v456 = vpack.c.b16 %v447, %v446
        %v457 = vpack.c.b16 %v449, %v448
        %466 = vmatpush.bf16.msra.mxu0 %v457
        %467 = vmatpush.bf16.msra.mxu0 %v456
        %468 = vmatpush.bf16.msra.mxu0 %v455
        %469 = vmatpush.bf16.msra.mxu0 %v454
        %470 = vmatpush.bf16.msra.mxu0 %v453
        %471 = vmatpush.bf16.msra.mxu0 %v452
        %472 = vmatpush.bf16.msra.mxu0 %v451
        %473 = vmatpush.bf16.msra.mxu0 %v450
        %474 = vmatmul.bf16.gmra.mxu0 %v413
        %v475 = vpop.f32.mrf.mxu0
        %v476 = vadd.f32 %v416, %v475
        %v477 = vpop.f32.mrf.mxu0
        %v478 = vadd.f32 %v416, %v477
        %479 = vmatmul.bf16.gmra.mxu0 %v414
        %v480 = vpop.f32.mrf.mxu0
        %v481 = vadd.f32 %v416, %v480
        %v482 = vpop.f32.mrf.mxu0
        %v483 = vadd.f32 %v416, %v482
        %484 = vdwg.mxu0
        %v485 = vmax.f32 %v476, 0.0
        %v486 = vmax.f32 %v478, 0.0
        %v487 = vmax.f32 %v481, 0.0
        %v488 = vmax.f32 %v483, 0.0
        %v489 = vmax.f32 %v485, %v486
        %v490 = vmax.f32 %v489, %v487
        %v491 = vmax.f32 %v490, %v488
        %492 = vst [vmem:[%s305] sm:$0xff] %v491
        %s493 = sand.u32 %s190, 1
        %s494 = scalar_lea.sflag [#allocation7], %s493
        %s495 = sand.u32 %s190, 1
        %s496 = smul.addr %s495, 8
        %s497 = scalar_lea.vmem [#allocation8], %s496
        // Predicated region
        $region63: #{tpu_custom_call.1} parent=43 // pred_check
          %p498 = pneg %p200
        $region64: #{tpu_custom_call.1} parent=43 // pred_check_branch
          %500 = sbr.rel (%p498) target = $region66
        $region65: #{tpu_custom_call.1} parent=43 // pred_region
          %502 = vsyncadd %s494, 0
          %s503 = sadd.s32 %s35, %s34
          %s504 = smul.addr %s503, 8
          %s505 = scalar_lea.hbm %s7, %s504
          %s507 = sshll.u32 %s497, 4
          %s508 = int_to_ptr.vmem [resolvable:$true] %s507
          %s509 = sshll.u32 %s505, 4
          %s510 = int_to_ptr.hbm [resolvable:$true] %s509
          %512 = dma.vmem_to_hbm [thread:$0]  %s508, 128, %s510, %s494
        $region66: #{tpu_custom_call.1} parent=43 // pred_fallthru
          _
      $region44: #{tpu_custom_call.1} parent=5 // pred_fallthru
        _
      %p513 = scmp.le.s32.totalorder 2, %s25
      // Predicated region
      $region67: #{tpu_custom_call.1} parent=5 // pred_check
        %p514 = pneg %p513
      $region68: #{tpu_custom_call.1} parent=5 // pred_check_branch
        %516 = sbr.rel (%p514) target = $region70
      $region69: #{tpu_custom_call.1} parent=5 // pred_region
        %s517 = ssub.s32 %s25, 2
        // Predicated region
        $region71: #{tpu_custom_call.1} parent=69 // pred_check
          %p518 = pneg %p206
        $region72: #{tpu_custom_call.1} parent=69 // pred_check_branch
          %520 = sbr.rel (%p518) target = $region74
        $region73: #{tpu_custom_call.1} parent=69 // pred_region
          %s521 = sand.u32 %s191, 1
          %s522 = scalar_lea.sflag [#allocation7], %s521
          %s523 = sand.u32 %s191, 1
          %s524 = smul.addr %s523, 8
          %s525 = scalar_lea.vmem [#allocation8], %s524
          %527 = dma.done %s522, 128
        $region74: #{tpu_custom_call.1} parent=69 // pred_fallthru
          _
      $region70: #{tpu_custom_call.1} parent=5 // pred_fallthru
        _
    $region6: #{tpu_custom_call.1} parent=1 // loop_footer
      %s29 = sadd.s32 1, %s25
    $region7: #{tpu_custom_call.1} parent=1 // loop_footer_branch
      %24 = sbr.rel target = $region3
    $region8: #{tpu_custom_call.1} parent=1 // loop_exit
      _
    %528 = vsyncpa [#allocation6], 1
    %s529 = scalar_lea.sflag [#allocation6], 1
    %530 = vsyncpa %s529, 1
    %531 = vsyncpa [#allocation7], 1
    %s532 = scalar_lea.sflag [#allocation7], 1
    %533 = vsyncpa %s532, 1

</llo_original>
